<compile_context>
chip_gen: v5e
topology: v5e:2x2
jax: 0.10.0
libtpu: 0.0.40
codegen_flags: <defaults>
</compile_context>

<pallas_src>
import jax
import jax.numpy as jnp
from jax.experimental import pallas as pl
from jax.experimental.pallas import tpu as pltpu


LANE = 128      # pad every feature dim to a multiple of the lane width
SUBLANE = 8     # batch tile must be a multiple of the sublane width


def _round_up(n, m):
    return ((n + m - 1) // m) * m


def mlp_kernel(x_ref, *refs):
    """Fused MLP forward on one (tb, n_in_p) batch tile.

    refs = (w0, b0, w1, b1, ..., w_{L-1}, b_{L-1}, out_ref)
    Layers 0..L-2 are Linear + ReLU (the nn.Sequential of LinearWActivation),
    layer L-1 is the final `clf` Linear (no activation).

    Weights arrive as bf16 (MXU operands); biases, inter-layer activations and
    the matmul accumulation stay f32.
    """
    out_ref = refs[-1]
    param_refs = refs[:-1]
    n_layers = len(param_refs) // 2

    h = x_ref[...]                                   # bf16 input activations
    for l in range(n_layers):
        w = param_refs[2 * l][...]                   # (fin_p, fout_p) bf16
        b = param_refs[2 * l + 1][...]               # (1, fout_p)     f32
        lhs = h if h.dtype == jnp.bfloat16 else h.astype(jnp.bfloat16)
        acc = jnp.dot(lhs, w, preferred_element_type=jnp.float32)
        h = acc + b                                  # f32 elementwise
        if l < n_layers - 1:                         # ReLU on all but clf
            h = jnp.maximum(h, 0.0)
    out_ref[...] = h.astype(out_ref.dtype)


def prepare_mlp_params(params, n_features):
    """One-time (x-independent) padding + bf16 cast of all layer parameters.

    params: list of (W (in,out) f32, b (1,out) f32) per layer, clf last.
    Returns (flat_padded_params, padded_dims).  Call once and reuse.
    """
    dims = [n_features] + [w.shape[1] for (w, _) in params]
    dims_p = tuple(_round_up(d, LANE) for d in dims)

    flat = []
    for l, (w, b) in enumerate(params):
        fin_p, fout_p = dims_p[l], dims_p[l + 1]
        w_p = jnp.zeros((fin_p, fout_p), jnp.bfloat16)
        w_p = w_p.at[:w.shape[0], :w.shape[1]].set(w.astype(jnp.bfloat16))
        b_p = jnp.zeros((1, fout_p), jnp.float32)
        b_p = b_p.at[:, :b.shape[1]].set(b.astype(jnp.float32))
        flat.extend([w_p, b_p])
    flat = tuple(jax.device_put(p) for p in flat)
    return flat, dims_p


def make_my_prediction_net(params, n_features, *, tb=128, single_buffer=True):
    """Builds a jitted forward fn with padded params cached (computed once)."""
    flat_params, dims_p = prepare_mlp_params(params, n_features)
    n_layers = len(params)
    n_out = params[-1][0].shape[1]
    n_in_p, n_out_p = dims_p[0], dims_p[-1]

    def forward(x, *flat):
        B, n_in = x.shape
        # Batch tile: clamp to the sublane-rounded batch.  For the toy B=16
        # case this yields tb_eff=16 -> a single full-batch tile (no wasted
        # MXU rows, no per-step pipeline overhead).
        tb_eff = max(SUBLANE, _round_up(min(tb, _round_up(B, SUBLANE)), SUBLANE))
        B_p = _round_up(B, tb_eff)
        grid = (B_p // tb_eff,)
        single_step = grid[0] == 1

        # Only x padding happens per call; params were padded once at init.
        x_p = jnp.zeros((B_p, n_in_p), jnp.bfloat16)
        x_p = x_p.at[:B, :n_in].set(x.astype(jnp.bfloat16))

        def _spec(shape, index_map, const):
            if single_buffer and const:
                # Constant index_map (weights/biases) or 1-step grid (x/out):
                # no benefit from double-buffering, halve the VMEM footprint.
                return pl.BlockSpec(shape, index_map,
                                    pipeline_mode=pl.Buffered(1))
            return pl.BlockSpec(shape, index_map)

        in_specs = [_spec((tb_eff, n_in_p), lambda i: (i, 0), single_step)]
        for l in range(n_layers):
            fin_p, fout_p = dims_p[l], dims_p[l + 1]
            in_specs.append(_spec((fin_p, fout_p), lambda i: (0, 0), True))
            in_specs.append(_spec((1, fout_p), lambda i: (0, 0), True))
        out_spec = _spec((tb_eff, n_out_p), lambda i: (i, 0), single_step)

        # ---- explicit VMEM budget (resident footprint + headroom) ----------
        out_itemsize = jnp.dtype(x.dtype).itemsize
        const_bytes = sum(p.size * p.dtype.itemsize for p in flat)
        const_mult = 1 if single_buffer else 2
        io_mult = 1 if (single_buffer and single_step) else 2
        x_tile = tb_eff * n_in_p * 2                  # bf16
        o_tile = tb_eff * n_out_p * out_itemsize
        act_bytes = tb_eff * max(dims_p) * 4          # widest f32 intermediate
        footprint = (const_mult * const_bytes
                     + io_mult * (x_tile + o_tile) + act_bytes)
        vmem_limit = int(min(64 << 20,                # stay under v7x physical
                             max(4 << 20, int(footprint * 1.5) + (2 << 20))))

        flops = 2 * B_p * sum(dims_p[l] * dims_p[l + 1]
                              for l in range(n_layers))
        bytes_accessed = int(x_p.size * 2 + const_bytes
                             + B_p * n_out_p * out_itemsize)

        out_p = pl.pallas_call(
            mlp_kernel,
            out_shape=jax.ShapeDtypeStruct((B_p, n_out_p), x.dtype),
            grid_spec=pltpu.PrefetchScalarGridSpec(
                num_scalar_prefetch=0,
                grid=grid,
                in_specs=in_specs,
                out_specs=out_spec,
            ),
            compiler_params=pltpu.CompilerParams(
                dimension_semantics=("parallel",),
                vmem_limit_bytes=vmem_limit),
            cost_estimate=pl.CostEstimate(
                flops=flops, transcendentals=0,
                bytes_accessed=bytes_accessed),
        )(x_p, *flat)

        return out_p[:B, :n_out]

    fwd = jax.jit(forward)

    def apply(x):
        return fwd(x, *flat_params)

    return apply


def init_params(key, layers, n_features, o_features):
    """Deterministic parameter init matching MyPredictionNet's shapes.

    nn.Sequential of LinearWActivation: (n_features -> layers... -> o_features),
    then clf: Linear(o_features -> n_features).
    """
    layers_in = [n_features] + layers
    layers_out = layers + [o_features]
    dims = list(zip(layers_in, layers_out)) + [(o_features, n_features)]  # clf
    params = []
    for (fin, fout) in dims:
        key, kw, kb = jax.random.split(key, 3)
        bound = 1.0 / (fin ** 0.5)
        # stored as (in, out) = transpose of PyTorch's (out, in) weight
        w = jax.random.uniform(kw, (fin, fout), jnp.float32, -bound, bound)
        b = jax.random.uniform(kb, (1, fout), jnp.float32, -bound, bound)
        params.append((w, b))
    return params


def reference_forward(x, params):
    """Pure-f32 reference matching MyPredictionNet.forward."""
    h = x
    for i, (w, b) in enumerate(params):
        h = h @ w + b
        if i < len(params) - 1:
            h = jnp.maximum(h, 0.0)
    return h


if __name__ == "__main__":
    # Small, forward-consistent shapes: batch=16, n_features=32,
    # hidden layers=[64, 48], o_features=32.
    key = jax.random.PRNGKey(0)
    kx, kp = jax.random.split(key)

    batch, n_features, o_features = 16, 32, 32
    layers = [64, 48]

    x = jax.random.normal(kx, (batch, n_features), jnp.float32)
    params = init_params(kp, layers, n_features, o_features)

    try:
        net = make_my_prediction_net(params, n_features, tb=128,
                                     single_buffer=True)
        out = jax.block_until_ready(net(x))
    except Exception:
        # Graceful fallback for JAX versions without BlockSpec pipeline_mode.
        net = make_my_prediction_net(params, n_features, tb=128,
                                     single_buffer=False)
        out = jax.block_until_ready(net(x))

    ref = reference_forward(x, params)
    assert out.shape == (batch, n_features)
    # bf16 MXU operands + f32 accumulation vs. pure-f32 reference.
    assert jnp.allclose(out, ref, atol=2e-2, rtol=2e-2)
    print("KERNEL_OK")
</pallas_src>

<mosaic_0001>
module attributes {stable_mosaic.version = 11 : i64} {
  func.func @mlp_kernel(%arg0: i32, %arg1: memref<16x128xbf16, #tpu.memory_space<vmem>>, %arg2: memref<128x128xbf16, #tpu.memory_space<vmem>>, %arg3: memref<1x128xf32, #tpu.memory_space<vmem>>, %arg4: memref<128x128xbf16, #tpu.memory_space<vmem>>, %arg5: memref<1x128xf32, #tpu.memory_space<vmem>>, %arg6: memref<128x128xbf16, #tpu.memory_space<vmem>>, %arg7: memref<1x128xf32, #tpu.memory_space<vmem>>, %arg8: memref<128x128xbf16, #tpu.memory_space<vmem>>, %arg9: memref<1x128xf32, #tpu.memory_space<vmem>>, %arg10: memref<16x128xf32, #tpu.memory_space<vmem>>) attributes {dimension_semantics = [#tpu.dimension_semantics<parallel>], iteration_bounds = array<i64: 1>, scalar_prefetch = 0 : i64, scratch_operands = 0 : i64, tpu.core_type = #tpu.core_type<tc>, window_params = [{pipeline_mode = #tpu.pipeline_mode<synchronous>, transform_indices = @transform_0, window_bounds = array<i64: 16, 128>}, {pipeline_mode = #tpu.pipeline_mode<synchronous>, transform_indices = @transform_1, window_bounds = array<i64: 128, 128>}, {pipeline_mode = #tpu.pipeline_mode<synchronous>, transform_indices = @transform_2, window_bounds = array<i64: 1, 128>}, {pipeline_mode = #tpu.pipeline_mode<synchronous>, transform_indices = @transform_3, window_bounds = array<i64: 128, 128>}, {pipeline_mode = #tpu.pipeline_mode<synchronous>, transform_indices = @transform_4, window_bounds = array<i64: 1, 128>}, {pipeline_mode = #tpu.pipeline_mode<synchronous>, transform_indices = @transform_5, window_bounds = array<i64: 128, 128>}, {pipeline_mode = #tpu.pipeline_mode<synchronous>, transform_indices = @transform_6, window_bounds = array<i64: 1, 128>}, {pipeline_mode = #tpu.pipeline_mode<synchronous>, transform_indices = @transform_7, window_bounds = array<i64: 128, 128>}, {pipeline_mode = #tpu.pipeline_mode<synchronous>, transform_indices = @transform_8, window_bounds = array<i64: 1, 128>}, {pipeline_mode = #tpu.pipeline_mode<synchronous>, transform_indices = @transform_9, window_bounds = array<i64: 16, 128>}]} {
    %c0 = arith.constant 0 : index
    %c0_0 = arith.constant 0 : index
    %0 = vector.load %arg1[%c0, %c0_0] : memref<16x128xbf16, #tpu.memory_space<vmem>>, vector<16x128xbf16>
    %c0_1 = arith.constant 0 : index
    %c0_2 = arith.constant 0 : index
    %1 = vector.load %arg2[%c0_1, %c0_2] : memref<128x128xbf16, #tpu.memory_space<vmem>>, vector<128x128xbf16>
    %c0_3 = arith.constant 0 : index
    %c0_4 = arith.constant 0 : index
    %2 = vector.load %arg3[%c0_3, %c0_4] : memref<1x128xf32, #tpu.memory_space<vmem>>, vector<1x128xf32>
    %cst = arith.constant dense<0.000000e+00> : vector<16x128xf32>
    %3 = tpu.matmul %0, %1, %cst {dimension_numbers = #tpu.dot_dimension_numbers<[1], [0], [0], [1], [0, 0, 1, 1], [], []>} : vector<16x128xbf16>, vector<128x128xbf16>, vector<16x128xf32> -> vector<16x128xf32>
    %4 = vector.broadcast %2 : vector<1x128xf32> to vector<16x128xf32>
    %5 = arith.addf %3, %4 : vector<16x128xf32>
    %cst_5 = arith.constant 0.000000e+00 : f32
    %6 = vector.broadcast %cst_5 : f32 to vector<16x128xf32>
    %7 = arith.maximumf %5, %6 : vector<16x128xf32>
    %c0_6 = arith.constant 0 : index
    %c0_7 = arith.constant 0 : index
    %8 = vector.load %arg4[%c0_6, %c0_7] : memref<128x128xbf16, #tpu.memory_space<vmem>>, vector<128x128xbf16>
    %c0_8 = arith.constant 0 : index
    %c0_9 = arith.constant 0 : index
    %9 = vector.load %arg5[%c0_8, %c0_9] : memref<1x128xf32, #tpu.memory_space<vmem>>, vector<1x128xf32>
    %10 = arith.truncf %7 : vector<16x128xf32> to vector<16x128xbf16>
    %cst_10 = arith.constant dense<0.000000e+00> : vector<16x128xf32>
    %11 = tpu.matmul %10, %8, %cst_10 {dimension_numbers = #tpu.dot_dimension_numbers<[1], [0], [0], [1], [0, 0, 1, 1], [], []>} : vector<16x128xbf16>, vector<128x128xbf16>, vector<16x128xf32> -> vector<16x128xf32>
    %12 = vector.broadcast %9 : vector<1x128xf32> to vector<16x128xf32>
    %13 = arith.addf %11, %12 : vector<16x128xf32>
    %cst_11 = arith.constant 0.000000e+00 : f32
    %14 = vector.broadcast %cst_11 : f32 to vector<16x128xf32>
    %15 = arith.maximumf %13, %14 : vector<16x128xf32>
    %c0_12 = arith.constant 0 : index
    %c0_13 = arith.constant 0 : index
    %16 = vector.load %arg6[%c0_12, %c0_13] : memref<128x128xbf16, #tpu.memory_space<vmem>>, vector<128x128xbf16>
    %c0_14 = arith.constant 0 : index
    %c0_15 = arith.constant 0 : index
    %17 = vector.load %arg7[%c0_14, %c0_15] : memref<1x128xf32, #tpu.memory_space<vmem>>, vector<1x128xf32>
    %18 = arith.truncf %15 : vector<16x128xf32> to vector<16x128xbf16>
    %cst_16 = arith.constant dense<0.000000e+00> : vector<16x128xf32>
    %19 = tpu.matmul %18, %16, %cst_16 {dimension_numbers = #tpu.dot_dimension_numbers<[1], [0], [0], [1], [0, 0, 1, 1], [], []>} : vector<16x128xbf16>, vector<128x128xbf16>, vector<16x128xf32> -> vector<16x128xf32>
    %20 = vector.broadcast %17 : vector<1x128xf32> to vector<16x128xf32>
    %21 = arith.addf %19, %20 : vector<16x128xf32>
    %cst_17 = arith.constant 0.000000e+00 : f32
    %22 = vector.broadcast %cst_17 : f32 to vector<16x128xf32>
    %23 = arith.maximumf %21, %22 : vector<16x128xf32>
    %c0_18 = arith.constant 0 : index
    %c0_19 = arith.constant 0 : index
    %24 = vector.load %arg8[%c0_18, %c0_19] : memref<128x128xbf16, #tpu.memory_space<vmem>>, vector<128x128xbf16>
    %c0_20 = arith.constant 0 : index
    %c0_21 = arith.constant 0 : index
    %25 = vector.load %arg9[%c0_20, %c0_21] : memref<1x128xf32, #tpu.memory_space<vmem>>, vector<1x128xf32>
    %26 = arith.truncf %23 : vector<16x128xf32> to vector<16x128xbf16>
    %cst_22 = arith.constant dense<0.000000e+00> : vector<16x128xf32>
    %27 = tpu.matmul %26, %24, %cst_22 {dimension_numbers = #tpu.dot_dimension_numbers<[1], [0], [0], [1], [0, 0, 1, 1], [], []>} : vector<16x128xbf16>, vector<128x128xbf16>, vector<16x128xf32> -> vector<16x128xf32>
    %28 = vector.broadcast %25 : vector<1x128xf32> to vector<16x128xf32>
    %29 = arith.addf %27, %28 : vector<16x128xf32>
    %c0_23 = arith.constant 0 : index
    %c0_24 = arith.constant 0 : index
    %30 = vector.load %arg10[%c0_23, %c0_24] : memref<16x128xf32, #tpu.memory_space<vmem>>, vector<16x128xf32>
    tpu.vector_store %arg10[%c0_23, %c0_24], %29 {strides = array<i32>} : memref<16x128xf32, #tpu.memory_space<vmem>>, vector<16x128xf32>,
    return
  }
  func.func @transform_0(%arg0: i32) -> (i32, i32) {
    %c0_i32 = arith.constant 0 : i32
    %c0_i32_0 = arith.constant 0 : i32
    return %arg0, %c0_i32 : i32, i32
  }
  func.func @transform_1(%arg0: i32) -> (i32, i32) {
    %c0_i32 = arith.constant 0 : i32
    %c0_i32_0 = arith.constant 0 : i32
    %c0_i32_1 = arith.constant 0 : i32
    return %c0_i32, %c0_i32_0 : i32, i32
  }
  func.func @transform_2(%arg0: i32) -> (i32, i32) {
    %c0_i32 = arith.constant 0 : i32
    %c0_i32_0 = arith.constant 0 : i32
    %c0_i32_1 = arith.constant 0 : i32
    return %c0_i32, %c0_i32_0 : i32, i32
  }
  func.func @transform_3(%arg0: i32) -> (i32, i32) {
    %c0_i32 = arith.constant 0 : i32
    %c0_i32_0 = arith.constant 0 : i32
    %c0_i32_1 = arith.constant 0 : i32
    return %c0_i32, %c0_i32_0 : i32, i32
  }
  func.func @transform_4(%arg0: i32) -> (i32, i32) {
    %c0_i32 = arith.constant 0 : i32
    %c0_i32_0 = arith.constant 0 : i32
    %c0_i32_1 = arith.constant 0 : i32
    return %c0_i32, %c0_i32_0 : i32, i32
  }
  func.func @transform_5(%arg0: i32) -> (i32, i32) {
    %c0_i32 = arith.constant 0 : i32
    %c0_i32_0 = arith.constant 0 : i32
    %c0_i32_1 = arith.constant 0 : i32
    return %c0_i32, %c0_i32_0 : i32, i32
  }
  func.func @transform_6(%arg0: i32) -> (i32, i32) {
    %c0_i32 = arith.constant 0 : i32
    %c0_i32_0 = arith.constant 0 : i32
    %c0_i32_1 = arith.constant 0 : i32
    return %c0_i32, %c0_i32_0 : i32, i32
  }
  func.func @transform_7(%arg0: i32) -> (i32, i32) {
    %c0_i32 = arith.constant 0 : i32
    %c0_i32_0 = arith.constant 0 : i32
    %c0_i32_1 = arith.constant 0 : i32
    return %c0_i32, %c0_i32_0 : i32, i32
  }
  func.func @transform_8(%arg0: i32) -> (i32, i32) {
    %c0_i32 = arith.constant 0 : i32
    %c0_i32_0 = arith.constant 0 : i32
    %c0_i32_1 = arith.constant 0 : i32
    return %c0_i32, %c0_i32_0 : i32, i32
  }
  func.func @transform_9(%arg0: i32) -> (i32, i32) {
    %c0_i32 = arith.constant 0 : i32
    %c0_i32_0 = arith.constant 0 : i32
    return %arg0, %c0_i32 : i32, i32
  }
}

module attributes {stable_mosaic.version = 11 : i64} {
  func.func @mlp_kernel(%arg0: i32, %arg1: memref<16x128xbf16, #tpu.memory_space<vmem>>, %arg2: memref<128x128xbf16, #tpu.memory_space<vmem>>, %arg3: memref<1x128xf32, #tpu.memory_space<vmem>>, %arg4: memref<128x128xbf16, #tpu.memory_space<vmem>>, %arg5: memref<1x128xf32, #tpu.memory_space<vmem>>, %arg6: memref<128x128xbf16, #tpu.memory_space<vmem>>, %arg7: memref<1x128xf32, #tpu.memory_space<vmem>>, %arg8: memref<128x128xbf16, #tpu.memory_space<vmem>>, %arg9: memref<1x128xf32, #tpu.memory_space<vmem>>, %arg10: memref<16x128xf32, #tpu.memory_space<vmem>>) attributes {dimension_semantics = [#tpu.dimension_semantics<parallel>], iteration_bounds = array<i64: 1>, scalar_prefetch = 0 : i64, scratch_operands = 0 : i64, tpu.core_type = #tpu.core_type<tc>, window_params = [{transform_indices = @transform_0, window_bounds = array<i64: 16, 128>}, {pipeline_mode = #tpu.pipeline_mode<synchronous>, transform_indices = @transform_1, window_bounds = array<i64: 128, 128>}, {pipeline_mode = #tpu.pipeline_mode<synchronous>, transform_indices = @transform_2, window_bounds = array<i64: 1, 128>}, {pipeline_mode = #tpu.pipeline_mode<synchronous>, transform_indices = @transform_3, window_bounds = array<i64: 128, 128>}, {pipeline_mode = #tpu.pipeline_mode<synchronous>, transform_indices = @transform_4, window_bounds = array<i64: 1, 128>}, {pipeline_mode = #tpu.pipeline_mode<synchronous>, transform_indices = @transform_5, window_bounds = array<i64: 128, 128>}, {pipeline_mode = #tpu.pipeline_mode<synchronous>, transform_indices = @transform_6, window_bounds = array<i64: 1, 128>}, {pipeline_mode = #tpu.pipeline_mode<synchronous>, transform_indices = @transform_7, window_bounds = array<i64: 128, 128>}, {pipeline_mode = #tpu.pipeline_mode<synchronous>, transform_indices = @transform_8, window_bounds = array<i64: 1, 128>}, {transform_indices = @transform_9, window_bounds = array<i64: 16, 128>}]} {
    %c0 = arith.constant 0 : index
    %c0_0 = arith.constant 0 : index
    %0 = vector.load %arg1[%c0, %c0_0] : memref<16x128xbf16, #tpu.memory_space<vmem>>, vector<16x128xbf16>
    %c0_1 = arith.constant 0 : index
    %c0_2 = arith.constant 0 : index
    %1 = vector.load %arg2[%c0_1, %c0_2] : memref<128x128xbf16, #tpu.memory_space<vmem>>, vector<128x128xbf16>
    %c0_3 = arith.constant 0 : index
    %c0_4 = arith.constant 0 : index
    %2 = vector.load %arg3[%c0_3, %c0_4] : memref<1x128xf32, #tpu.memory_space<vmem>>, vector<1x128xf32>
    %cst = arith.constant dense<0.000000e+00> : vector<16x128xf32>
    %3 = tpu.matmul %0, %1, %cst {dimension_numbers = #tpu.dot_dimension_numbers<[1], [0], [0], [1], [0, 0, 1, 1], [], []>} : vector<16x128xbf16>, vector<128x128xbf16>, vector<16x128xf32> -> vector<16x128xf32>
    %4 = vector.broadcast %2 : vector<1x128xf32> to vector<16x128xf32>
    %5 = arith.addf %3, %4 : vector<16x128xf32>
    %cst_5 = arith.constant 0.000000e+00 : f32
    %6 = vector.broadcast %cst_5 : f32 to vector<16x128xf32>
    %7 = arith.maximumf %5, %6 : vector<16x128xf32>
    %c0_6 = arith.constant 0 : index
    %c0_7 = arith.constant 0 : index
    %8 = vector.load %arg4[%c0_6, %c0_7] : memref<128x128xbf16, #tpu.memory_space<vmem>>, vector<128x128xbf16>
    %c0_8 = arith.constant 0 : index
    %c0_9 = arith.constant 0 : index
    %9 = vector.load %arg5[%c0_8, %c0_9] : memref<1x128xf32, #tpu.memory_space<vmem>>, vector<1x128xf32>
    %10 = arith.truncf %7 : vector<16x128xf32> to vector<16x128xbf16>
    %cst_10 = arith.constant dense<0.000000e+00> : vector<16x128xf32>
    %11 = tpu.matmul %10, %8, %cst_10 {dimension_numbers = #tpu.dot_dimension_numbers<[1], [0], [0], [1], [0, 0, 1, 1], [], []>} : vector<16x128xbf16>, vector<128x128xbf16>, vector<16x128xf32> -> vector<16x128xf32>
    %12 = vector.broadcast %9 : vector<1x128xf32> to vector<16x128xf32>
    %13 = arith.addf %11, %12 : vector<16x128xf32>
    %cst_11 = arith.constant 0.000000e+00 : f32
    %14 = vector.broadcast %cst_11 : f32 to vector<16x128xf32>
    %15 = arith.maximumf %13, %14 : vector<16x128xf32>
    %c0_12 = arith.constant 0 : index
    %c0_13 = arith.constant 0 : index
    %16 = vector.load %arg6[%c0_12, %c0_13] : memref<128x128xbf16, #tpu.memory_space<vmem>>, vector<128x128xbf16>
    %c0_14 = arith.constant 0 : index
    %c0_15 = arith.constant 0 : index
    %17 = vector.load %arg7[%c0_14, %c0_15] : memref<1x128xf32, #tpu.memory_space<vmem>>, vector<1x128xf32>
    %18 = arith.truncf %15 : vector<16x128xf32> to vector<16x128xbf16>
    %cst_16 = arith.constant dense<0.000000e+00> : vector<16x128xf32>
    %19 = tpu.matmul %18, %16, %cst_16 {dimension_numbers = #tpu.dot_dimension_numbers<[1], [0], [0], [1], [0, 0, 1, 1], [], []>} : vector<16x128xbf16>, vector<128x128xbf16>, vector<16x128xf32> -> vector<16x128xf32>
    %20 = vector.broadcast %17 : vector<1x128xf32> to vector<16x128xf32>
    %21 = arith.addf %19, %20 : vector<16x128xf32>
    %cst_17 = arith.constant 0.000000e+00 : f32
    %22 = vector.broadcast %cst_17 : f32 to vector<16x128xf32>
    %23 = arith.maximumf %21, %22 : vector<16x128xf32>
    %c0_18 = arith.constant 0 : index
    %c0_19 = arith.constant 0 : index
    %24 = vector.load %arg8[%c0_18, %c0_19] : memref<128x128xbf16, #tpu.memory_space<vmem>>, vector<128x128xbf16>
    %c0_20 = arith.constant 0 : index
    %c0_21 = arith.constant 0 : index
    %25 = vector.load %arg9[%c0_20, %c0_21] : memref<1x128xf32, #tpu.memory_space<vmem>>, vector<1x128xf32>
    %26 = arith.truncf %23 : vector<16x128xf32> to vector<16x128xbf16>
    %cst_22 = arith.constant dense<0.000000e+00> : vector<16x128xf32>
    %27 = tpu.matmul %26, %24, %cst_22 {dimension_numbers = #tpu.dot_dimension_numbers<[1], [0], [0], [1], [0, 0, 1, 1], [], []>} : vector<16x128xbf16>, vector<128x128xbf16>, vector<16x128xf32> -> vector<16x128xf32>
    %28 = vector.broadcast %25 : vector<1x128xf32> to vector<16x128xf32>
    %29 = arith.addf %27, %28 : vector<16x128xf32>
    %c0_23 = arith.constant 0 : index
    %c0_24 = arith.constant 0 : index
    %30 = vector.load %arg10[%c0_23, %c0_24] : memref<16x128xf32, #tpu.memory_space<vmem>>, vector<16x128xf32>
    tpu.vector_store %arg10[%c0_23, %c0_24], %29 {strides = array<i32>} : memref<16x128xf32, #tpu.memory_space<vmem>>, vector<16x128xf32>,
    return
  }
  func.func @transform_0(%arg0: i32) -> (i32, i32) {
    %c0_i32 = arith.constant 0 : i32
    %c0_i32_0 = arith.constant 0 : i32
    return %arg0, %c0_i32 : i32, i32
  }
  func.func @transform_1(%arg0: i32) -> (i32, i32) {
    %c0_i32 = arith.constant 0 : i32
    %c0_i32_0 = arith.constant 0 : i32
    %c0_i32_1 = arith.constant 0 : i32
    return %c0_i32, %c0_i32_0 : i32, i32
  }
  func.func @transform_2(%arg0: i32) -> (i32, i32) {
    %c0_i32 = arith.constant 0 : i32
    %c0_i32_0 = arith.constant 0 : i32
    %c0_i32_1 = arith.constant 0 : i32
    return %c0_i32, %c0_i32_0 : i32, i32
  }
  func.func @transform_3(%arg0: i32) -> (i32, i32) {
    %c0_i32 = arith.constant 0 : i32
    %c0_i32_0 = arith.constant 0 : i32
    %c0_i32_1 = arith.constant 0 : i32
    return %c0_i32, %c0_i32_0 : i32, i32
  }
  func.func @transform_4(%arg0: i32) -> (i32, i32) {
    %c0_i32 = arith.constant 0 : i32
    %c0_i32_0 = arith.constant 0 : i32
    %c0_i32_1 = arith.constant 0 : i32
    return %c0_i32, %c0_i32_0 : i32, i32
  }
  func.func @transform_5(%arg0: i32) -> (i32, i32) {
    %c0_i32 = arith.constant 0 : i32
    %c0_i32_0 = arith.constant 0 : i32
    %c0_i32_1 = arith.constant 0 : i32
    return %c0_i32, %c0_i32_0 : i32, i32
  }
  func.func @transform_6(%arg0: i32) -> (i32, i32) {
    %c0_i32 = arith.constant 0 : i32
    %c0_i32_0 = arith.constant 0 : i32
    %c0_i32_1 = arith.constant 0 : i32
    return %c0_i32, %c0_i32_0 : i32, i32
  }
  func.func @transform_7(%arg0: i32) -> (i32, i32) {
    %c0_i32 = arith.constant 0 : i32
    %c0_i32_0 = arith.constant 0 : i32
    %c0_i32_1 = arith.constant 0 : i32
    return %c0_i32, %c0_i32_0 : i32, i32
  }
  func.func @transform_8(%arg0: i32) -> (i32, i32) {
    %c0_i32 = arith.constant 0 : i32
    %c0_i32_0 = arith.constant 0 : i32
    %c0_i32_1 = arith.constant 0 : i32
    return %c0_i32, %c0_i32_0 : i32, i32
  }
  func.func @transform_9(%arg0: i32) -> (i32, i32) {
    %c0_i32 = arith.constant 0 : i32
    %c0_i32_0 = arith.constant 0 : i32
    return %arg0, %c0_i32 : i32, i32
  }
}

</mosaic_0001>

<llo_original>
// kernel: forward.1
$region0: #{forward.1}
  #allocation0 [shape = 'u32[]', space=smem, size = 0x4, offset = 0x4, fixed_abs, tag = 'smem constant byte address 0x4 - core index']
  #allocation1 [shape = 'u32[72,128]{1,0:T(1,128)}', space=vmem, size = 0x9000, scoped, tag = 'internal scratch']
  %s0 = inlined_call_operand.vmem [shape: bf16[16,128], index: 0, kind: input, shape index: {}]
  %s1 = inlined_call_operand.hbm [shape: bf16[128,128], index: 1, kind: input, shape index: {}]
  %s2 = inlined_call_operand.vmem [shape: f32[1,128], index: 2, kind: input, shape index: {}]
  %s3 = inlined_call_operand.hbm [shape: bf16[128,128], index: 3, kind: input, shape index: {}]
  %s4 = inlined_call_operand.vmem [shape: f32[1,128], index: 4, kind: input, shape index: {}]
  %s5 = inlined_call_operand.hbm [shape: bf16[128,128], index: 5, kind: input, shape index: {}]
  %s6 = inlined_call_operand.vmem [shape: f32[1,128], index: 6, kind: input, shape index: {}]
  %s7 = inlined_call_operand.hbm [shape: bf16[128,128], index: 7, kind: input, shape index: {}]
  %s8 = inlined_call_operand.vmem [shape: f32[1,128], index: 8, kind: input, shape index: {}]
  %s9 = inlined_call_operand.hbm [shape: f32[16,128], index: 9, kind: output, shape index: {}]
  %s10 = sld [smem:[#allocation0]]
  $region62: #{forward.1} parent=0
    _
  %s12 = ssub.s32 1, %s10
  %s13 = scalar_select 0, %s12, %s10
  $region1: #{forward.1} parent=0
    #allocation2 [shape = 'u8[32768]{0}', space=vmem, size = 0x8000, scoped, tag = 'input window, operand 1, single buffered']
    #allocation3 [shape = 's32[1]{0}', space=sflag, size = 0x4, scoped, tag = 'scoped memory for forward.1']
    #allocation4 [shape = 's32[1]{0}', space=sflag, size = 0x4, scoped, tag = 'scoped memory for forward.1']
    #allocation5 [shape = 'u8[32768]{0}', space=vmem, size = 0x8000, scoped, tag = 'input window, operand 3, single buffered']
    #allocation6 [shape = 's32[1]{0}', space=sflag, size = 0x4, scoped, tag = 'scoped memory for forward.1']
    #allocation7 [shape = 'u8[32768]{0}', space=vmem, size = 0x8000, scoped, tag = 'input window, operand 5, single buffered']
    #allocation8 [shape = 'u8[32768]{0}', space=vmem, size = 0x8000, scoped, tag = 'input window, operand 7, single buffered']
    #allocation9 [shape = 's32[1]{0}', space=sflag, size = 0x4, scoped, tag = 'scoped memory for forward.1']
    #allocation10 [shape = 'u8[8192]{0}', space=vmem, size = 0x2000, scoped, tag = 'output window, operand 0, single buffered']
    %14 = vsyncpa [#allocation3], 0
    %15 = vsyncpa [#allocation6], 0
    %16 = vsyncpa [#allocation9], 0
    %17 = vsyncpa [#allocation4], 0
    // Predicated region
    $region2: #{forward.1} parent=1 // pred_check
      _
    $region3: #{forward.1} parent=1 // pred_check_branch
      %19 = sbr.rel (0) target = $region5
    $region4: #{forward.1} parent=1 // pred_region
      _
    $region5: #{forward.1} parent=1 // pred_fallthru
      _
    // Predicated region
    $region6: #{forward.1} parent=1 // pred_check
      _
    $region7: #{forward.1} parent=1 // pred_check_branch
      %21 = sbr.rel (0) target = $region9
    $region8: #{forward.1} parent=1 // pred_region
      %23 = vsyncadd [#allocation3], 0
      %s24 = sshll.u32 %s1, 4
      %s25 = int_to_ptr.hbm [resolvable:$true] %s24
      %s26 = sshll.u32 [#allocation2], 4
      %s27 = int_to_ptr.vmem [resolvable:$true] %s26
      %32 = dma.hbm_to_vmem [thread:$0]  %s25, 1024, %s27, [#allocation3], 64, 64, 4
    $region9: #{forward.1} parent=1 // pred_fallthru
      _
    // Predicated region
    $region10: #{forward.1} parent=1 // pred_check
      _
    $region11: #{forward.1} parent=1 // pred_check_branch
      %34 = sbr.rel (0) target = $region13
    $region12: #{forward.1} parent=1 // pred_region
      _
    $region13: #{forward.1} parent=1 // pred_fallthru
      _
    // Predicated region
    $region14: #{forward.1} parent=1 // pred_check
      _
    $region15: #{forward.1} parent=1 // pred_check_branch
      %36 = sbr.rel (0) target = $region17
    $region16: #{forward.1} parent=1 // pred_region
      %38 = vsyncadd [#allocation6], 0
      %s39 = sshll.u32 %s3, 4
      %s40 = int_to_ptr.hbm [resolvable:$true] %s39
      %s41 = sshll.u32 [#allocation5], 4
      %s42 = int_to_ptr.vmem [resolvable:$true] %s41
      %47 = dma.hbm_to_vmem [thread:$0]  %s40, 1024, %s42, [#allocation6], 64, 64, 4
    $region17: #{forward.1} parent=1 // pred_fallthru
      _
    // Predicated region
    $region18: #{forward.1} parent=1 // pred_check
      _
    $region19: #{forward.1} parent=1 // pred_check_branch
      %49 = sbr.rel (0) target = $region21
    $region20: #{forward.1} parent=1 // pred_region
      _
    $region21: #{forward.1} parent=1 // pred_fallthru
      _
    // Predicated region
    $region22: #{forward.1} parent=1 // pred_check
      _
    $region23: #{forward.1} parent=1 // pred_check_branch
      %51 = sbr.rel (0) target = $region25
    $region24: #{forward.1} parent=1 // pred_region
      %53 = vsyncadd [#allocation6], 0
      %s54 = sshll.u32 %s5, 4
      %s55 = int_to_ptr.hbm [resolvable:$true] %s54
      %s56 = sshll.u32 [#allocation7], 4
      %s57 = int_to_ptr.vmem [resolvable:$true] %s56
      %62 = dma.hbm_to_vmem [thread:$0]  %s55, 1024, %s57, [#allocation6], 64, 64, 4
    $region25: #{forward.1} parent=1 // pred_fallthru
      _
    // Predicated region
    $region26: #{forward.1} parent=1 // pred_check
      _
    $region27: #{forward.1} parent=1 // pred_check_branch
      %64 = sbr.rel (0) target = $region29
    $region28: #{forward.1} parent=1 // pred_region
      _
    $region29: #{forward.1} parent=1 // pred_fallthru
      _
    // Predicated region
    $region30: #{forward.1} parent=1 // pred_check
      _
    $region31: #{forward.1} parent=1 // pred_check_branch
      %66 = sbr.rel (0) target = $region33
    $region32: #{forward.1} parent=1 // pred_region
      %68 = vsyncadd [#allocation9], 0
      %s69 = sshll.u32 %s7, 4
      %s70 = int_to_ptr.hbm [resolvable:$true] %s69
      %s71 = sshll.u32 [#allocation8], 4
      %s72 = int_to_ptr.vmem [resolvable:$true] %s71
      %77 = dma.hbm_to_vmem [thread:$0]  %s70, 1024, %s72, [#allocation9], 64, 64, 4
    $region33: #{forward.1} parent=1 // pred_fallthru
      _
    // Predicated region
    $region34: #{forward.1} parent=1 // pred_check
      _
    $region35: #{forward.1} parent=1 // pred_check_branch
      %79 = sbr.rel (0) target = $region37
    $region36: #{forward.1} parent=1 // pred_region
      _
    $region37: #{forward.1} parent=1 // pred_fallthru
      _
    // Predicated region
    $region38: #{forward.1} parent=1 // pred_check
      _
    $region39: #{forward.1} parent=1 // pred_check_branch
      %81 = sbr.rel (0) target = $region41
    $region40: #{forward.1} parent=1 // pred_region
      %83 = dma.done [#allocation3], 1024
    $region41: #{forward.1} parent=1 // pred_fallthru
      _
    // Predicated region
    $region42: #{forward.1} parent=1 // pred_check
      _
    $region43: #{forward.1} parent=1 // pred_check_branch
      %85 = sbr.rel (0) target = $region45
    $region44: #{forward.1} parent=1 // pred_region
      %87 = dma.done [#allocation6], 1024
    $region45: #{forward.1} parent=1 // pred_fallthru
      _
    // Predicated region
    $region46: #{forward.1} parent=1 // pred_check
      _
    $region47: #{forward.1} parent=1 // pred_check_branch
      %89 = sbr.rel (0) target = $region49
    $region48: #{forward.1} parent=1 // pred_region
      %91 = dma.done [#allocation6], 1024
    $region49: #{forward.1} parent=1 // pred_fallthru
      _
    // Predicated region
    $region50: #{forward.1} parent=1 // pred_check
      _
    $region51: #{forward.1} parent=1 // pred_check_branch
      %93 = sbr.rel (0) target = $region53
    $region52: #{forward.1} parent=1 // pred_region
      %95 = dma.done [#allocation9], 1024
    $region53: #{forward.1} parent=1 // pred_fallthru
      _
    %v96 = vld [vmem:[%s0] sm:$0xf]
    %v97 = vld [vmem:[%s0 + $0x4] sm:$0xf]
    %v98 = vld [vmem:[#allocation2] sm:$0xf]
    %v99 = vld [vmem:[#allocation2 + $0x4] sm:$0xf]
    %v100 = vld [vmem:[#allocation2 + $0x8] sm:$0xf]
    %v101 = vld [vmem:[#allocation2 + $0xc] sm:$0xf]
    %v102 = vld [vmem:[#allocation2 + $0x10] sm:$0xf]
    %v103 = vld [vmem:[#allocation2 + $0x14] sm:$0xf]
    %v104 = vld [vmem:[#allocation2 + $0x18] sm:$0xf]
    %v105 = vld [vmem:[#allocation2 + $0x1c] sm:$0xf]
    %v106 = vld [vmem:[#allocation2 + $0x20] sm:$0xf]
    %v107 = vld [vmem:[#allocation2 + $0x24] sm:$0xf]
    %v108 = vld [vmem:[#allocation2 + $0x28] sm:$0xf]
    %v109 = vld [vmem:[#allocation2 + $0x2c] sm:$0xf]
    %v110 = vld [vmem:[#allocation2 + $0x30] sm:$0xf]
    %v111 = vld [vmem:[#allocation2 + $0x34] sm:$0xf]
    %v112 = vld [vmem:[#allocation2 + $0x38] sm:$0xf]
    %v113 = vld [vmem:[#allocation2 + $0x3c] sm:$0xf]
    %v114 = vld [vmem:[%s2] sm:$0x1]
    %v116 = vperm.slane %v114, 0
    %v120 = vunpack.c.l.b16 %v96
    %v121 = vunpack.c.l.b16 %v97
    %v122 = vpack.c.b16 %v121, %v120
    %v140 = vunpack.c.l.b16 %v98
    %v141 = vunpack.c.l.b16 %v99
    %v142 = vunpack.c.l.b16 %v100
    %v143 = vunpack.c.l.b16 %v101
    %v144 = vunpack.c.l.b16 %v102
    %v145 = vunpack.c.l.b16 %v103
    %v146 = vunpack.c.l.b16 %v104
    %v147 = vunpack.c.l.b16 %v105
    %v148 = vunpack.c.l.b16 %v106
    %v149 = vunpack.c.l.b16 %v107
    %v150 = vunpack.c.l.b16 %v108
    %v151 = vunpack.c.l.b16 %v109
    %v152 = vunpack.c.l.b16 %v110
    %v153 = vunpack.c.l.b16 %v111
    %v154 = vunpack.c.l.b16 %v112
    %v155 = vunpack.c.l.b16 %v113
    %v156 = vpack.c.b16 %v141, %v140
    %v157 = vpack.c.b16 %v143, %v142
    %v158 = vpack.c.b16 %v145, %v144
    %v159 = vpack.c.b16 %v147, %v146
    %v160 = vpack.c.b16 %v149, %v148
    %v161 = vpack.c.b16 %v151, %v150
    %v162 = vpack.c.b16 %v153, %v152
    %v163 = vpack.c.b16 %v155, %v154
    %172 = vmatpush.bf16.msra.mxu0 %v163
    %173 = vmatpush.bf16.msra.mxu0 %v162
    %174 = vmatpush.bf16.msra.mxu0 %v161
    %175 = vmatpush.bf16.msra.mxu0 %v160
    %176 = vmatpush.bf16.msra.mxu0 %v159
    %177 = vmatpush.bf16.msra.mxu0 %v158
    %178 = vmatpush.bf16.msra.mxu0 %v157
    %179 = vmatpush.bf16.msra.mxu0 %v156
    %180 = vmatmul.bf16.gmra.mxu0 %v122
    %v181 = vpop.f32.mrf.mxu0
    %v182 = vadd.f32 %v116, %v181
    %v183 = vpop.f32.mrf.mxu0
    %v184 = vadd.f32 %v116, %v183
    %185 = vdwg.mxu0
    %v186 = vmax.f32 %v182, 0.0
    %v187 = vmax.f32 %v184, 0.0
    %v188 = vld [vmem:[#allocation5] sm:$0xf]
    %v189 = vld [vmem:[#allocation5 + $0x4] sm:$0xf]
    %v190 = vld [vmem:[#allocation5 + $0x8] sm:$0xf]
    %v191 = vld [vmem:[#allocation5 + $0xc] sm:$0xf]
    %v192 = vld [vmem:[#allocation5 + $0x10] sm:$0xf]
    %v193 = vld [vmem:[#allocation5 + $0x14] sm:$0xf]
    %v194 = vld [vmem:[#allocation5 + $0x18] sm:$0xf]
    %v195 = vld [vmem:[#allocation5 + $0x1c] sm:$0xf]
    %v196 = vld [vmem:[#allocation5 + $0x20] sm:$0xf]
    %v197 = vld [vmem:[#allocation5 + $0x24] sm:$0xf]
    %v198 = vld [vmem:[#allocation5 + $0x28] sm:$0xf]
    %v199 = vld [vmem:[#allocation5 + $0x2c] sm:$0xf]
    %v200 = vld [vmem:[#allocation5 + $0x30] sm:$0xf]
    %v201 = vld [vmem:[#allocation5 + $0x34] sm:$0xf]
    %v202 = vld [vmem:[#allocation5 + $0x38] sm:$0xf]
    %v203 = vld [vmem:[#allocation5 + $0x3c] sm:$0xf]
    %v204 = vld [vmem:[%s4] sm:$0x1]
    %v205 = vpack.c.bf16 %v187, %v186
    %v207 = vperm.slane %v204, 0
    %v225 = vunpack.c.l.b16 %v188
    %v226 = vunpack.c.l.b16 %v189
    %v227 = vunpack.c.l.b16 %v190
    %v228 = vunpack.c.l.b16 %v191
    %v229 = vunpack.c.l.b16 %v192
    %v230 = vunpack.c.l.b16 %v193
    %v231 = vunpack.c.l.b16 %v194
    %v232 = vunpack.c.l.b16 %v195
    %v233 = vunpack.c.l.b16 %v196
    %v234 = vunpack.c.l.b16 %v197
    %v235 = vunpack.c.l.b16 %v198
    %v236 = vunpack.c.l.b16 %v199
    %v237 = vunpack.c.l.b16 %v200
    %v238 = vunpack.c.l.b16 %v201
    %v239 = vunpack.c.l.b16 %v202
    %v240 = vunpack.c.l.b16 %v203
    %v241 = vpack.c.b16 %v226, %v225
    %v242 = vpack.c.b16 %v228, %v227
    %v243 = vpack.c.b16 %v230, %v229
    %v244 = vpack.c.b16 %v232, %v231
    %v245 = vpack.c.b16 %v234, %v233
    %v246 = vpack.c.b16 %v236, %v235
    %v247 = vpack.c.b16 %v238, %v237
    %v248 = vpack.c.b16 %v240, %v239
    %257 = vmatpush.bf16.msra.mxu0 %v248
    %258 = vmatpush.bf16.msra.mxu0 %v247
    %259 = vmatpush.bf16.msra.mxu0 %v246
    %260 = vmatpush.bf16.msra.mxu0 %v245
    %261 = vmatpush.bf16.msra.mxu0 %v244
    %262 = vmatpush.bf16.msra.mxu0 %v243
    %263 = vmatpush.bf16.msra.mxu0 %v242
    %264 = vmatpush.bf16.msra.mxu0 %v241
    %265 = vmatmul.bf16.gmra.mxu0 %v205
    %v266 = vpop.f32.mrf.mxu0
    %v267 = vadd.f32 %v207, %v266
    %v268 = vpop.f32.mrf.mxu0
    %v269 = vadd.f32 %v207, %v268
    %270 = vdwg.mxu0
    %v271 = vmax.f32 %v267, 0.0
    %v272 = vmax.f32 %v269, 0.0
    %v273 = vld [vmem:[#allocation7] sm:$0xf]
    %v274 = vld [vmem:[#allocation7 + $0x4] sm:$0xf]
    %v275 = vld [vmem:[#allocation7 + $0x8] sm:$0xf]
    %v276 = vld [vmem:[#allocation7 + $0xc] sm:$0xf]
    %v277 = vld [vmem:[#allocation7 + $0x10] sm:$0xf]
    %v278 = vld [vmem:[#allocation7 + $0x14] sm:$0xf]
    %v279 = vld [vmem:[#allocation7 + $0x18] sm:$0xf]
    %v280 = vld [vmem:[#allocation7 + $0x1c] sm:$0xf]
    %v281 = vld [vmem:[#allocation7 + $0x20] sm:$0xf]
    %v282 = vld [vmem:[#allocation7 + $0x24] sm:$0xf]
    %v283 = vld [vmem:[#allocation7 + $0x28] sm:$0xf]
    %v284 = vld [vmem:[#allocation7 + $0x2c] sm:$0xf]
    %v285 = vld [vmem:[#allocation7 + $0x30] sm:$0xf]
    %v286 = vld [vmem:[#allocation7 + $0x34] sm:$0xf]
    %v287 = vld [vmem:[#allocation7 + $0x38] sm:$0xf]
    %v288 = vld [vmem:[#allocation7 + $0x3c] sm:$0xf]
    %v289 = vld [vmem:[%s6] sm:$0x1]
    %v290 = vpack.c.bf16 %v272, %v271
    %v292 = vperm.slane %v289, 0
    %v310 = vunpack.c.l.b16 %v273
    %v311 = vunpack.c.l.b16 %v274
    %v312 = vunpack.c.l.b16 %v275
    %v313 = vunpack.c.l.b16 %v276
    %v314 = vunpack.c.l.b16 %v277
    %v315 = vunpack.c.l.b16 %v278
    %v316 = vunpack.c.l.b16 %v279
    %v317 = vunpack.c.l.b16 %v280
    %v318 = vunpack.c.l.b16 %v281
    %v319 = vunpack.c.l.b16 %v282
    %v320 = vunpack.c.l.b16 %v283
    %v321 = vunpack.c.l.b16 %v284
    %v322 = vunpack.c.l.b16 %v285
    %v323 = vunpack.c.l.b16 %v286
    %v324 = vunpack.c.l.b16 %v287
    %v325 = vunpack.c.l.b16 %v288
    %v326 = vpack.c.b16 %v311, %v310
    %v327 = vpack.c.b16 %v313, %v312
    %v328 = vpack.c.b16 %v315, %v314
    %v329 = vpack.c.b16 %v317, %v316
    %v330 = vpack.c.b16 %v319, %v318
    %v331 = vpack.c.b16 %v321, %v320
    %v332 = vpack.c.b16 %v323, %v322
    %v333 = vpack.c.b16 %v325, %v324
    %342 = vmatpush.bf16.msra.mxu0 %v333
    %343 = vmatpush.bf16.msra.mxu0 %v332
    %344 = vmatpush.bf16.msra.mxu0 %v331
    %345 = vmatpush.bf16.msra.mxu0 %v330
    %346 = vmatpush.bf16.msra.mxu0 %v329
    %347 = vmatpush.bf16.msra.mxu0 %v328
    %348 = vmatpush.bf16.msra.mxu0 %v327
    %349 = vmatpush.bf16.msra.mxu0 %v326
    %350 = vmatmul.bf16.gmra.mxu0 %v290
    %v351 = vpop.f32.mrf.mxu0
    %v352 = vadd.f32 %v292, %v351
    %v353 = vpop.f32.mrf.mxu0
    %v354 = vadd.f32 %v292, %v353
    %355 = vdwg.mxu0
    %v356 = vmax.f32 %v352, 0.0
    %v357 = vmax.f32 %v354, 0.0
    %v358 = vld [vmem:[#allocation8] sm:$0xf]
    %v359 = vld [vmem:[#allocation8 + $0x4] sm:$0xf]
    %v360 = vld [vmem:[#allocation8 + $0x8] sm:$0xf]
    %v361 = vld [vmem:[#allocation8 + $0xc] sm:$0xf]
    %v362 = vld [vmem:[#allocation8 + $0x10] sm:$0xf]
    %v363 = vld [vmem:[#allocation8 + $0x14] sm:$0xf]
    %v364 = vld [vmem:[#allocation8 + $0x18] sm:$0xf]
    %v365 = vld [vmem:[#allocation8 + $0x1c] sm:$0xf]
    %v366 = vld [vmem:[#allocation8 + $0x20] sm:$0xf]
    %v367 = vld [vmem:[#allocation8 + $0x24] sm:$0xf]
    %v368 = vld [vmem:[#allocation8 + $0x28] sm:$0xf]
    %v369 = vld [vmem:[#allocation8 + $0x2c] sm:$0xf]
    %v370 = vld [vmem:[#allocation8 + $0x30] sm:$0xf]
    %v371 = vld [vmem:[#allocation8 + $0x34] sm:$0xf]
    %v372 = vld [vmem:[#allocation8 + $0x38] sm:$0xf]
    %v373 = vld [vmem:[#allocation8 + $0x3c] sm:$0xf]
    %v374 = vld [vmem:[%s8] sm:$0x1]
    %v375 = vpack.c.bf16 %v357, %v356
    %v377 = vperm.slane %v374, 0
    %v395 = vunpack.c.l.b16 %v358
    %v396 = vunpack.c.l.b16 %v359
    %v397 = vunpack.c.l.b16 %v360
    %v398 = vunpack.c.l.b16 %v361
    %v399 = vunpack.c.l.b16 %v362
    %v400 = vunpack.c.l.b16 %v363
    %v401 = vunpack.c.l.b16 %v364
    %v402 = vunpack.c.l.b16 %v365
    %v403 = vunpack.c.l.b16 %v366
    %v404 = vunpack.c.l.b16 %v367
    %v405 = vunpack.c.l.b16 %v368
    %v406 = vunpack.c.l.b16 %v369
    %v407 = vunpack.c.l.b16 %v370
    %v408 = vunpack.c.l.b16 %v371
    %v409 = vunpack.c.l.b16 %v372
    %v410 = vunpack.c.l.b16 %v373
    %v411 = vpack.c.b16 %v396, %v395
    %v412 = vpack.c.b16 %v398, %v397
    %v413 = vpack.c.b16 %v400, %v399
    %v414 = vpack.c.b16 %v402, %v401
    %v415 = vpack.c.b16 %v404, %v403
    %v416 = vpack.c.b16 %v406, %v405
    %v417 = vpack.c.b16 %v408, %v407
    %v418 = vpack.c.b16 %v410, %v409
    %427 = vmatpush.bf16.msra.mxu0 %v418
    %428 = vmatpush.bf16.msra.mxu0 %v417
    %429 = vmatpush.bf16.msra.mxu0 %v416
    %430 = vmatpush.bf16.msra.mxu0 %v415
    %431 = vmatpush.bf16.msra.mxu0 %v414
    %432 = vmatpush.bf16.msra.mxu0 %v413
    %433 = vmatpush.bf16.msra.mxu0 %v412
    %434 = vmatpush.bf16.msra.mxu0 %v411
    %435 = vmatmul.bf16.gmra.mxu0 %v375
    %v436 = vpop.f32.mrf.mxu0
    %v437 = vadd.f32 %v377, %v436
    %v438 = vpop.f32.mrf.mxu0
    %v439 = vadd.f32 %v377, %v438
    %440 = vdwg.mxu0
    %441 = vst [vmem:[#allocation10] sm:$0xff] %v437
    %442 = vst [vmem:[#allocation10 + $0x8] sm:$0xff] %v439
    // Predicated region
    $region54: #{forward.1} parent=1 // pred_check
      _
    $region55: #{forward.1} parent=1 // pred_check_branch
      %444 = sbr.rel (0) target = $region57
    $region56: #{forward.1} parent=1 // pred_region
      %446 = vsyncadd [#allocation4], 0
      %s447 = sshll.u32 [#allocation10], 4
      %s448 = int_to_ptr.vmem [resolvable:$true] %s447
      %s449 = sshll.u32 %s9, 4
      %s450 = int_to_ptr.hbm [resolvable:$true] %s449
      %455 = dma.vmem_to_hbm [thread:$0]  %s448, 256, %s450, [#allocation4], 128, 128, 8
    $region57: #{forward.1} parent=1 // pred_fallthru
      _
    // Predicated region
    $region58: #{forward.1} parent=1 // pred_check
      _
    $region59: #{forward.1} parent=1 // pred_check_branch
      %457 = sbr.rel (0) target = $region61
    $region60: #{forward.1} parent=1 // pred_region
      %459 = dma.done [#allocation4], 256
    $region61: #{forward.1} parent=1 // pred_fallthru
      _
    %460 = vsyncpa [#allocation3], 1
    %461 = vsyncpa [#allocation6], 1
    %462 = vsyncpa [#allocation9], 1
    %463 = vsyncpa [#allocation4], 1

// kernel: forward.1
$region0: #{forward.1}
  #allocation0 [shape = 'u32[]', space=smem, size = 0x4, offset = 0x4, fixed_abs, tag = 'smem constant byte address 0x4 - core index']
  #allocation1 [shape = 'u32[72,128]{1,0:T(1,128)}', space=vmem, size = 0x9000, scoped, tag = 'internal scratch']
  %s0 = inlined_call_operand.vmem [shape: bf16[16,128], index: 0, kind: input, shape index: {}]
  %s1 = inlined_call_operand.hbm [shape: bf16[128,128], index: 1, kind: input, shape index: {}]
  %s2 = inlined_call_operand.vmem [shape: f32[1,128], index: 2, kind: input, shape index: {}]
  %s3 = inlined_call_operand.hbm [shape: bf16[128,128], index: 3, kind: input, shape index: {}]
  %s4 = inlined_call_operand.vmem [shape: f32[1,128], index: 4, kind: input, shape index: {}]
  %s5 = inlined_call_operand.hbm [shape: bf16[128,128], index: 5, kind: input, shape index: {}]
  %s6 = inlined_call_operand.vmem [shape: f32[1,128], index: 6, kind: input, shape index: {}]
  %s7 = inlined_call_operand.hbm [shape: bf16[128,128], index: 7, kind: input, shape index: {}]
  %s8 = inlined_call_operand.vmem [shape: f32[1,128], index: 8, kind: input, shape index: {}]
  %s9 = inlined_call_operand.hbm [shape: f32[16,128], index: 9, kind: output, shape index: {}]
  %s10 = sld [smem:[#allocation0]]
  $region62: #{forward.1} parent=0
    _
  %s12 = ssub.s32 1, %s10
  %s13 = scalar_select 0, %s12, %s10
  $region1: #{forward.1} parent=0
    #allocation2 [shape = 'u8[32768]{0}', space=vmem, size = 0x8000, scoped, tag = 'input window, operand 1, single buffered']
    #allocation3 [shape = 's32[1]{0}', space=sflag, size = 0x4, scoped, tag = 'scoped memory for forward.1']
    #allocation4 [shape = 's32[1]{0}', space=sflag, size = 0x4, scoped, tag = 'scoped memory for forward.1']
    #allocation5 [shape = 'u8[32768]{0}', space=vmem, size = 0x8000, scoped, tag = 'input window, operand 3, single buffered']
    #allocation6 [shape = 's32[1]{0}', space=sflag, size = 0x4, scoped, tag = 'scoped memory for forward.1']
    #allocation7 [shape = 'u8[32768]{0}', space=vmem, size = 0x8000, scoped, tag = 'input window, operand 5, single buffered']
    #allocation8 [shape = 'u8[32768]{0}', space=vmem, size = 0x8000, scoped, tag = 'input window, operand 7, single buffered']
    #allocation9 [shape = 's32[1]{0}', space=sflag, size = 0x4, scoped, tag = 'scoped memory for forward.1']
    #allocation10 [shape = 'u8[8192]{0}', space=vmem, size = 0x2000, scoped, tag = 'output window, operand 0, single buffered']
    %14 = vsyncpa [#allocation3], 0
    %15 = vsyncpa [#allocation6], 0
    %16 = vsyncpa [#allocation9], 0
    %17 = vsyncpa [#allocation4], 0
    // Predicated region
    $region2: #{forward.1} parent=1 // pred_check
      _
    $region3: #{forward.1} parent=1 // pred_check_branch
      %19 = sbr.rel (0) target = $region5
    $region4: #{forward.1} parent=1 // pred_region
      _
    $region5: #{forward.1} parent=1 // pred_fallthru
      _
    // Predicated region
    $region6: #{forward.1} parent=1 // pred_check
      _
    $region7: #{forward.1} parent=1 // pred_check_branch
      %21 = sbr.rel (0) target = $region9
    $region8: #{forward.1} parent=1 // pred_region
      %23 = vsyncadd [#allocation3], 0
      %s24 = sshll.u32 %s1, 4
      %s25 = int_to_ptr.hbm [resolvable:$true] %s24
      %s26 = sshll.u32 [#allocation2], 4
      %s27 = int_to_ptr.vmem [resolvable:$true] %s26
      %32 = dma.hbm_to_vmem [thread:$0]  %s25, 1024, %s27, [#allocation3], 64, 64, 4
    $region9: #{forward.1} parent=1 // pred_fallthru
      _
    // Predicated region
    $region10: #{forward.1} parent=1 // pred_check
      _
    $region11: #{forward.1} parent=1 // pred_check_branch
      %34 = sbr.rel (0) target = $region13
    $region12: #{forward.1} parent=1 // pred_region
      _
    $region13: #{forward.1} parent=1 // pred_fallthru
      _
    // Predicated region
    $region14: #{forward.1} parent=1 // pred_check
      _
    $region15: #{forward.1} parent=1 // pred_check_branch
      %36 = sbr.rel (0) target = $region17
    $region16: #{forward.1} parent=1 // pred_region
      %38 = vsyncadd [#allocation6], 0
      %s39 = sshll.u32 %s3, 4
      %s40 = int_to_ptr.hbm [resolvable:$true] %s39
      %s41 = sshll.u32 [#allocation5], 4
      %s42 = int_to_ptr.vmem [resolvable:$true] %s41
      %47 = dma.hbm_to_vmem [thread:$0]  %s40, 1024, %s42, [#allocation6], 64, 64, 4
    $region17: #{forward.1} parent=1 // pred_fallthru
      _
    // Predicated region
    $region18: #{forward.1} parent=1 // pred_check
      _
    $region19: #{forward.1} parent=1 // pred_check_branch
      %49 = sbr.rel (0) target = $region21
    $region20: #{forward.1} parent=1 // pred_region
      _
    $region21: #{forward.1} parent=1 // pred_fallthru
      _
    // Predicated region
    $region22: #{forward.1} parent=1 // pred_check
      _
    $region23: #{forward.1} parent=1 // pred_check_branch
      %51 = sbr.rel (0) target = $region25
    $region24: #{forward.1} parent=1 // pred_region
      %53 = vsyncadd [#allocation6], 0
      %s54 = sshll.u32 %s5, 4
      %s55 = int_to_ptr.hbm [resolvable:$true] %s54
      %s56 = sshll.u32 [#allocation7], 4
      %s57 = int_to_ptr.vmem [resolvable:$true] %s56
      %62 = dma.hbm_to_vmem [thread:$0]  %s55, 1024, %s57, [#allocation6], 64, 64, 4
    $region25: #{forward.1} parent=1 // pred_fallthru
      _
    // Predicated region
    $region26: #{forward.1} parent=1 // pred_check
      _
    $region27: #{forward.1} parent=1 // pred_check_branch
      %64 = sbr.rel (0) target = $region29
    $region28: #{forward.1} parent=1 // pred_region
      _
    $region29: #{forward.1} parent=1 // pred_fallthru
      _
    // Predicated region
    $region30: #{forward.1} parent=1 // pred_check
      _
    $region31: #{forward.1} parent=1 // pred_check_branch
      %66 = sbr.rel (0) target = $region33
    $region32: #{forward.1} parent=1 // pred_region
      %68 = vsyncadd [#allocation9], 0
      %s69 = sshll.u32 %s7, 4
      %s70 = int_to_ptr.hbm [resolvable:$true] %s69
      %s71 = sshll.u32 [#allocation8], 4
      %s72 = int_to_ptr.vmem [resolvable:$true] %s71
      %77 = dma.hbm_to_vmem [thread:$0]  %s70, 1024, %s72, [#allocation9], 64, 64, 4
    $region33: #{forward.1} parent=1 // pred_fallthru
      _
    // Predicated region
    $region34: #{forward.1} parent=1 // pred_check
      _
    $region35: #{forward.1} parent=1 // pred_check_branch
      %79 = sbr.rel (0) target = $region37
    $region36: #{forward.1} parent=1 // pred_region
      _
    $region37: #{forward.1} parent=1 // pred_fallthru
      _
    // Predicated region
    $region38: #{forward.1} parent=1 // pred_check
      _
    $region39: #{forward.1} parent=1 // pred_check_branch
      %81 = sbr.rel (0) target = $region41
    $region40: #{forward.1} parent=1 // pred_region
      %83 = dma.done [#allocation3], 1024
    $region41: #{forward.1} parent=1 // pred_fallthru
      _
    // Predicated region
    $region42: #{forward.1} parent=1 // pred_check
      _
    $region43: #{forward.1} parent=1 // pred_check_branch
      %85 = sbr.rel (0) target = $region45
    $region44: #{forward.1} parent=1 // pred_region
      %87 = dma.done [#allocation6], 1024
    $region45: #{forward.1} parent=1 // pred_fallthru
      _
    // Predicated region
    $region46: #{forward.1} parent=1 // pred_check
      _
    $region47: #{forward.1} parent=1 // pred_check_branch
      %89 = sbr.rel (0) target = $region49
    $region48: #{forward.1} parent=1 // pred_region
      %91 = dma.done [#allocation6], 1024
    $region49: #{forward.1} parent=1 // pred_fallthru
      _
    // Predicated region
    $region50: #{forward.1} parent=1 // pred_check
      _
    $region51: #{forward.1} parent=1 // pred_check_branch
      %93 = sbr.rel (0) target = $region53
    $region52: #{forward.1} parent=1 // pred_region
      %95 = dma.done [#allocation9], 1024
    $region53: #{forward.1} parent=1 // pred_fallthru
      _
    %v96 = vld [vmem:[%s0] sm:$0xf]
    %v97 = vld [vmem:[%s0 + $0x4] sm:$0xf]
    %v98 = vld [vmem:[#allocation2] sm:$0xf]
    %v99 = vld [vmem:[#allocation2 + $0x4] sm:$0xf]
    %v100 = vld [vmem:[#allocation2 + $0x8] sm:$0xf]
    %v101 = vld [vmem:[#allocation2 + $0xc] sm:$0xf]
    %v102 = vld [vmem:[#allocation2 + $0x10] sm:$0xf]
    %v103 = vld [vmem:[#allocation2 + $0x14] sm:$0xf]
    %v104 = vld [vmem:[#allocation2 + $0x18] sm:$0xf]
    %v105 = vld [vmem:[#allocation2 + $0x1c] sm:$0xf]
    %v106 = vld [vmem:[#allocation2 + $0x20] sm:$0xf]
    %v107 = vld [vmem:[#allocation2 + $0x24] sm:$0xf]
    %v108 = vld [vmem:[#allocation2 + $0x28] sm:$0xf]
    %v109 = vld [vmem:[#allocation2 + $0x2c] sm:$0xf]
    %v110 = vld [vmem:[#allocation2 + $0x30] sm:$0xf]
    %v111 = vld [vmem:[#allocation2 + $0x34] sm:$0xf]
    %v112 = vld [vmem:[#allocation2 + $0x38] sm:$0xf]
    %v113 = vld [vmem:[#allocation2 + $0x3c] sm:$0xf]
    %v114 = vld [vmem:[%s2] sm:$0x1]
    %v116 = vperm.slane %v114, 0
    %v120 = vunpack.c.l.b16 %v96
    %v121 = vunpack.c.l.b16 %v97
    %v122 = vpack.c.b16 %v121, %v120
    %v140 = vunpack.c.l.b16 %v98
    %v141 = vunpack.c.l.b16 %v99
    %v142 = vunpack.c.l.b16 %v100
    %v143 = vunpack.c.l.b16 %v101
    %v144 = vunpack.c.l.b16 %v102
    %v145 = vunpack.c.l.b16 %v103
    %v146 = vunpack.c.l.b16 %v104
    %v147 = vunpack.c.l.b16 %v105
    %v148 = vunpack.c.l.b16 %v106
    %v149 = vunpack.c.l.b16 %v107
    %v150 = vunpack.c.l.b16 %v108
    %v151 = vunpack.c.l.b16 %v109
    %v152 = vunpack.c.l.b16 %v110
    %v153 = vunpack.c.l.b16 %v111
    %v154 = vunpack.c.l.b16 %v112
    %v155 = vunpack.c.l.b16 %v113
    %v156 = vpack.c.b16 %v141, %v140
    %v157 = vpack.c.b16 %v143, %v142
    %v158 = vpack.c.b16 %v145, %v144
    %v159 = vpack.c.b16 %v147, %v146
    %v160 = vpack.c.b16 %v149, %v148
    %v161 = vpack.c.b16 %v151, %v150
    %v162 = vpack.c.b16 %v153, %v152
    %v163 = vpack.c.b16 %v155, %v154
    %172 = vmatpush.bf16.msra.mxu0 %v163
    %173 = vmatpush.bf16.msra.mxu0 %v162
    %174 = vmatpush.bf16.msra.mxu0 %v161
    %175 = vmatpush.bf16.msra.mxu0 %v160
    %176 = vmatpush.bf16.msra.mxu0 %v159
    %177 = vmatpush.bf16.msra.mxu0 %v158
    %178 = vmatpush.bf16.msra.mxu0 %v157
    %179 = vmatpush.bf16.msra.mxu0 %v156
    %180 = vmatmul.bf16.gmra.mxu0 %v122
    %v181 = vpop.f32.mrf.mxu0
    %v182 = vadd.f32 %v116, %v181
    %v183 = vpop.f32.mrf.mxu0
    %v184 = vadd.f32 %v116, %v183
    %185 = vdwg.mxu0
    %v186 = vmax.f32 %v182, 0.0
    %v187 = vmax.f32 %v184, 0.0
    %v188 = vld [vmem:[#allocation5] sm:$0xf]
    %v189 = vld [vmem:[#allocation5 + $0x4] sm:$0xf]
    %v190 = vld [vmem:[#allocation5 + $0x8] sm:$0xf]
    %v191 = vld [vmem:[#allocation5 + $0xc] sm:$0xf]
    %v192 = vld [vmem:[#allocation5 + $0x10] sm:$0xf]
    %v193 = vld [vmem:[#allocation5 + $0x14] sm:$0xf]
    %v194 = vld [vmem:[#allocation5 + $0x18] sm:$0xf]
    %v195 = vld [vmem:[#allocation5 + $0x1c] sm:$0xf]
    %v196 = vld [vmem:[#allocation5 + $0x20] sm:$0xf]
    %v197 = vld [vmem:[#allocation5 + $0x24] sm:$0xf]
    %v198 = vld [vmem:[#allocation5 + $0x28] sm:$0xf]
    %v199 = vld [vmem:[#allocation5 + $0x2c] sm:$0xf]
    %v200 = vld [vmem:[#allocation5 + $0x30] sm:$0xf]
    %v201 = vld [vmem:[#allocation5 + $0x34] sm:$0xf]
    %v202 = vld [vmem:[#allocation5 + $0x38] sm:$0xf]
    %v203 = vld [vmem:[#allocation5 + $0x3c] sm:$0xf]
    %v204 = vld [vmem:[%s4] sm:$0x1]
    %v205 = vpack.c.bf16 %v187, %v186
    %v207 = vperm.slane %v204, 0
    %v225 = vunpack.c.l.b16 %v188
    %v226 = vunpack.c.l.b16 %v189
    %v227 = vunpack.c.l.b16 %v190
    %v228 = vunpack.c.l.b16 %v191
    %v229 = vunpack.c.l.b16 %v192
    %v230 = vunpack.c.l.b16 %v193
    %v231 = vunpack.c.l.b16 %v194
    %v232 = vunpack.c.l.b16 %v195
    %v233 = vunpack.c.l.b16 %v196
    %v234 = vunpack.c.l.b16 %v197
    %v235 = vunpack.c.l.b16 %v198
    %v236 = vunpack.c.l.b16 %v199
    %v237 = vunpack.c.l.b16 %v200
    %v238 = vunpack.c.l.b16 %v201
    %v239 = vunpack.c.l.b16 %v202
    %v240 = vunpack.c.l.b16 %v203
    %v241 = vpack.c.b16 %v226, %v225
    %v242 = vpack.c.b16 %v228, %v227
    %v243 = vpack.c.b16 %v230, %v229
    %v244 = vpack.c.b16 %v232, %v231
    %v245 = vpack.c.b16 %v234, %v233
    %v246 = vpack.c.b16 %v236, %v235
    %v247 = vpack.c.b16 %v238, %v237
    %v248 = vpack.c.b16 %v240, %v239
    %257 = vmatpush.bf16.msra.mxu0 %v248
    %258 = vmatpush.bf16.msra.mxu0 %v247
    %259 = vmatpush.bf16.msra.mxu0 %v246
    %260 = vmatpush.bf16.msra.mxu0 %v245
    %261 = vmatpush.bf16.msra.mxu0 %v244
    %262 = vmatpush.bf16.msra.mxu0 %v243
    %263 = vmatpush.bf16.msra.mxu0 %v242
    %264 = vmatpush.bf16.msra.mxu0 %v241
    %265 = vmatmul.bf16.gmra.mxu0 %v205
    %v266 = vpop.f32.mrf.mxu0
    %v267 = vadd.f32 %v207, %v266
    %v268 = vpop.f32.mrf.mxu0
    %v269 = vadd.f32 %v207, %v268
    %270 = vdwg.mxu0
    %v271 = vmax.f32 %v267, 0.0
    %v272 = vmax.f32 %v269, 0.0
    %v273 = vld [vmem:[#allocation7] sm:$0xf]
    %v274 = vld [vmem:[#allocation7 + $0x4] sm:$0xf]
    %v275 = vld [vmem:[#allocation7 + $0x8] sm:$0xf]
    %v276 = vld [vmem:[#allocation7 + $0xc] sm:$0xf]
    %v277 = vld [vmem:[#allocation7 + $0x10] sm:$0xf]
    %v278 = vld [vmem:[#allocation7 + $0x14] sm:$0xf]
    %v279 = vld [vmem:[#allocation7 + $0x18] sm:$0xf]
    %v280 = vld [vmem:[#allocation7 + $0x1c] sm:$0xf]
    %v281 = vld [vmem:[#allocation7 + $0x20] sm:$0xf]
    %v282 = vld [vmem:[#allocation7 + $0x24] sm:$0xf]
    %v283 = vld [vmem:[#allocation7 + $0x28] sm:$0xf]
    %v284 = vld [vmem:[#allocation7 + $0x2c] sm:$0xf]
    %v285 = vld [vmem:[#allocation7 + $0x30] sm:$0xf]
    %v286 = vld [vmem:[#allocation7 + $0x34] sm:$0xf]
    %v287 = vld [vmem:[#allocation7 + $0x38] sm:$0xf]
    %v288 = vld [vmem:[#allocation7 + $0x3c] sm:$0xf]
    %v289 = vld [vmem:[%s6] sm:$0x1]
    %v290 = vpack.c.bf16 %v272, %v271
    %v292 = vperm.slane %v289, 0
    %v310 = vunpack.c.l.b16 %v273
    %v311 = vunpack.c.l.b16 %v274
    %v312 = vunpack.c.l.b16 %v275
    %v313 = vunpack.c.l.b16 %v276
    %v314 = vunpack.c.l.b16 %v277
    %v315 = vunpack.c.l.b16 %v278
    %v316 = vunpack.c.l.b16 %v279
    %v317 = vunpack.c.l.b16 %v280
    %v318 = vunpack.c.l.b16 %v281
    %v319 = vunpack.c.l.b16 %v282
    %v320 = vunpack.c.l.b16 %v283
    %v321 = vunpack.c.l.b16 %v284
    %v322 = vunpack.c.l.b16 %v285
    %v323 = vunpack.c.l.b16 %v286
    %v324 = vunpack.c.l.b16 %v287
    %v325 = vunpack.c.l.b16 %v288
    %v326 = vpack.c.b16 %v311, %v310
    %v327 = vpack.c.b16 %v313, %v312
    %v328 = vpack.c.b16 %v315, %v314
    %v329 = vpack.c.b16 %v317, %v316
    %v330 = vpack.c.b16 %v319, %v318
    %v331 = vpack.c.b16 %v321, %v320
    %v332 = vpack.c.b16 %v323, %v322
    %v333 = vpack.c.b16 %v325, %v324
    %342 = vmatpush.bf16.msra.mxu0 %v333
    %343 = vmatpush.bf16.msra.mxu0 %v332
    %344 = vmatpush.bf16.msra.mxu0 %v331
    %345 = vmatpush.bf16.msra.mxu0 %v330
    %346 = vmatpush.bf16.msra.mxu0 %v329
    %347 = vmatpush.bf16.msra.mxu0 %v328
    %348 = vmatpush.bf16.msra.mxu0 %v327
    %349 = vmatpush.bf16.msra.mxu0 %v326
    %350 = vmatmul.bf16.gmra.mxu0 %v290
    %v351 = vpop.f32.mrf.mxu0
    %v352 = vadd.f32 %v292, %v351
    %v353 = vpop.f32.mrf.mxu0
    %v354 = vadd.f32 %v292, %v353
    %355 = vdwg.mxu0
    %v356 = vmax.f32 %v352, 0.0
    %v357 = vmax.f32 %v354, 0.0
    %v358 = vld [vmem:[#allocation8] sm:$0xf]
    %v359 = vld [vmem:[#allocation8 + $0x4] sm:$0xf]
    %v360 = vld [vmem:[#allocation8 + $0x8] sm:$0xf]
    %v361 = vld [vmem:[#allocation8 + $0xc] sm:$0xf]
    %v362 = vld [vmem:[#allocation8 + $0x10] sm:$0xf]
    %v363 = vld [vmem:[#allocation8 + $0x14] sm:$0xf]
    %v364 = vld [vmem:[#allocation8 + $0x18] sm:$0xf]
    %v365 = vld [vmem:[#allocation8 + $0x1c] sm:$0xf]
    %v366 = vld [vmem:[#allocation8 + $0x20] sm:$0xf]
    %v367 = vld [vmem:[#allocation8 + $0x24] sm:$0xf]
    %v368 = vld [vmem:[#allocation8 + $0x28] sm:$0xf]
    %v369 = vld [vmem:[#allocation8 + $0x2c] sm:$0xf]
    %v370 = vld [vmem:[#allocation8 + $0x30] sm:$0xf]
    %v371 = vld [vmem:[#allocation8 + $0x34] sm:$0xf]
    %v372 = vld [vmem:[#allocation8 + $0x38] sm:$0xf]
    %v373 = vld [vmem:[#allocation8 + $0x3c] sm:$0xf]
    %v374 = vld [vmem:[%s8] sm:$0x1]
    %v375 = vpack.c.bf16 %v357, %v356
    %v377 = vperm.slane %v374, 0
    %v395 = vunpack.c.l.b16 %v358
    %v396 = vunpack.c.l.b16 %v359
    %v397 = vunpack.c.l.b16 %v360
    %v398 = vunpack.c.l.b16 %v361
    %v399 = vunpack.c.l.b16 %v362
    %v400 = vunpack.c.l.b16 %v363
    %v401 = vunpack.c.l.b16 %v364
    %v402 = vunpack.c.l.b16 %v365
    %v403 = vunpack.c.l.b16 %v366
    %v404 = vunpack.c.l.b16 %v367
    %v405 = vunpack.c.l.b16 %v368
    %v406 = vunpack.c.l.b16 %v369
    %v407 = vunpack.c.l.b16 %v370
    %v408 = vunpack.c.l.b16 %v371
    %v409 = vunpack.c.l.b16 %v372
    %v410 = vunpack.c.l.b16 %v373
    %v411 = vpack.c.b16 %v396, %v395
    %v412 = vpack.c.b16 %v398, %v397
    %v413 = vpack.c.b16 %v400, %v399
    %v414 = vpack.c.b16 %v402, %v401
    %v415 = vpack.c.b16 %v404, %v403
    %v416 = vpack.c.b16 %v406, %v405
    %v417 = vpack.c.b16 %v408, %v407
    %v418 = vpack.c.b16 %v410, %v409
    %427 = vmatpush.bf16.msra.mxu0 %v418
    %428 = vmatpush.bf16.msra.mxu0 %v417
    %429 = vmatpush.bf16.msra.mxu0 %v416
    %430 = vmatpush.bf16.msra.mxu0 %v415
    %431 = vmatpush.bf16.msra.mxu0 %v414
    %432 = vmatpush.bf16.msra.mxu0 %v413
    %433 = vmatpush.bf16.msra.mxu0 %v412
    %434 = vmatpush.bf16.msra.mxu0 %v411
    %435 = vmatmul.bf16.gmra.mxu0 %v375
    %v436 = vpop.f32.mrf.mxu0
    %v437 = vadd.f32 %v377, %v436
    %v438 = vpop.f32.mrf.mxu0
    %v439 = vadd.f32 %v377, %v438
    %440 = vdwg.mxu0
    %441 = vst [vmem:[#allocation10] sm:$0xff] %v437
    %442 = vst [vmem:[#allocation10 + $0x8] sm:$0xff] %v439
    // Predicated region
    $region54: #{forward.1} parent=1 // pred_check
      _
    $region55: #{forward.1} parent=1 // pred_check_branch
      %444 = sbr.rel (0) target = $region57
    $region56: #{forward.1} parent=1 // pred_region
      %446 = vsyncadd [#allocation4], 0
      %s447 = sshll.u32 [#allocation10], 4
      %s448 = int_to_ptr.vmem [resolvable:$true] %s447
      %s449 = sshll.u32 %s9, 4
      %s450 = int_to_ptr.hbm [resolvable:$true] %s449
      %455 = dma.vmem_to_hbm [thread:$0]  %s448, 256, %s450, [#allocation4], 128, 128, 8
    $region57: #{forward.1} parent=1 // pred_fallthru
      _
    // Predicated region
    $region58: #{forward.1} parent=1 // pred_check
      _
    $region59: #{forward.1} parent=1 // pred_check_branch
      %457 = sbr.rel (0) target = $region61
    $region60: #{forward.1} parent=1 // pred_region
      %459 = dma.done [#allocation4], 256
    $region61: #{forward.1} parent=1 // pred_fallthru
      _
    %460 = vsyncpa [#allocation3], 1
    %461 = vsyncpa [#allocation6], 1
    %462 = vsyncpa [#allocation9], 1
    %463 = vsyncpa [#allocation4], 1

</llo_original>
